<compile_context>
chip_gen: v5e
topology: v5e:2x2
jax: 0.10.0
libtpu: 0.0.40
codegen_flags: <defaults>
</compile_context>

<pallas_src>
import functools

import jax
import jax.numpy as jnp
from jax.experimental import pallas as pl
from jax.experimental.pallas import tpu as pltpu


def _round_up(x, m):
    return ((x + m - 1) // m) * m


def _critic_kernel(n_hidden_layers, mxu_dtype, *refs):
    """Feature-major MLP: activations live as [H, tile_b] (batch on lanes).

    refs = (obs_T, act_T, w1_obs_T, w1_act_T, b1,
            [wh_T_i, bh_i] * n_hidden_layers, wo_row, bo, q_out)
    """
    idx = 0
    obs_ref = refs[idx]; idx += 1      # [obs_dim, tile_b] f32
    act_ref = refs[idx]; idx += 1      # [act_dim, tile_b] f32
    w1o_ref = refs[idx]; idx += 1      # [H, obs_dim]  (MXU operand dtype)
    w1a_ref = refs[idx]; idx += 1      # [H, act_dim]  (MXU operand dtype)
    b1_ref = refs[idx]; idx += 1       # [H, 1] f32
    hidden_refs = refs[idx: idx + 2 * n_hidden_layers]
    idx += 2 * n_hidden_layers
    wo_ref = refs[idx]; idx += 1       # [1, H]        (MXU operand dtype)
    bo_ref = refs[idx]; idx += 1       # (1, 1) f32 scalar in SMEM
    q_ref = refs[idx]                  # [1, tile_b] lane-dense output block

    # Inputs stay f32 in HBM; cast the tile here (rides in VPU slack) so the
    # wrapper never materialises a bf16 copy of the inputs.
    x_obs = obs_ref[...].astype(mxu_dtype)
    x_act = act_ref[...].astype(mxu_dtype)

    # fc1 on the (virtually concatenated) [obs | actions] features, feature-major:
    #   concat(obs, act) @ W1 == obs @ W1_obs + act @ W1_act, transposed:
    #   h_T = W1_obs^T @ obs_T + W1_act^T @ act_T + b1   -> [H, tile_b]
    h = (
        jnp.dot(w1o_ref[...], x_obs, preferred_element_type=jnp.float32)
        + jnp.dot(w1a_ref[...], x_act, preferred_element_type=jnp.float32)
        + b1_ref[...]
    )
    h = jnp.maximum(h, 0.0)  # ReLU / bias add in f32 (v5e VPU has no bf16)

    # Hidden Linear(hidden, hidden) layers + ReLU, still [H, tile_b].
    for li in range(n_hidden_layers):
        w = hidden_refs[2 * li][...]        # [H, H] (out x in)
        b = hidden_refs[2 * li + 1][...]    # [H, 1]
        h = jnp.dot(w, h.astype(w.dtype), preferred_element_type=jnp.float32) + b
        h = jnp.maximum(h, 0.0)

    # fc_out: canonical [1, H] @ [H, tile_b] -> lane-dense [1, tile_b] row
    # (unmasked vector stores; no transposes anywhere).
    q = jnp.dot(wo_ref[...], h.astype(wo_ref.dtype),
                preferred_element_type=jnp.float32)
    q_ref[...] = q + bo_ref[0, 0]


def _vmem_bytes_estimate(tile, obs_dim, act_dim, hidden, n_hidden_layers):
    """Rough per-step VMEM footprint (double-buffered streams + resident weights)."""
    r8 = lambda v: _round_up(v, 8)
    r128 = lambda v: _round_up(v, 128)
    f32 = 4
    # Double-buffered streaming blocks: obs/act tiles in, q row out.
    stream = 2 * f32 * tile * (r8(obs_dim) + r8(act_dim) + r8(1))
    # Grid-resident weight/bias blocks (lane padded, double-buffered by default).
    w_elems = (r8(hidden) * (r128(obs_dim) + r128(act_dim))
               + n_hidden_layers * r8(hidden) * r128(hidden)
               + (n_hidden_layers + 1) * r8(hidden) * r128(1)
               + r8(1) * r128(hidden))
    weights = 2 * f32 * w_elems
    # Live activation temps (h_T in f32, narrow MXU-dtype copy, compiler slack).
    temps = 6 * f32 * r8(hidden) * tile
    return stream + weights + temps


def facmac_critic_forward(obs, actions, params, *, tile_b=2048,
                          mxu_dtype=jnp.float32, min_grid_steps=2):
    """obs: [..., obs_dim], actions: [..., dim_actions], params: dict of weights.

    Returns q: [B, 1] float32 where B = prod(leading dims).

    mxu_dtype=jnp.bfloat16 runs both MXU operands (weights pre-cast in the
    wrapper, activations cast per-tile inside the kernel) in bf16 on the
    bf16-native MXU; accumulation and all elementwise math stay f32.  Note the
    observation/action features themselves are rounded to bf16 in that mode —
    keep the default f32 if the critic inputs need full precision.
    tile_b is the main tuning knob (per-grid-step overhead ~0.35 us).
    """
    obs2 = obs.reshape(-1, obs.shape[-1])
    act2 = actions.reshape(-1, actions.shape[-1])
    B, obs_dim = obs2.shape
    act_dim = act2.shape[-1]
    H = params["w1"].shape[1]
    n_hidden_layers = len(params["hidden"])

    # Feature-major HBM layout for the batch inputs: [feat, B] puts the batch on
    # the 128-lane axis so every VMEM tile and every matmul in the kernel is
    # lane-dense.  This single layout transpose is the only wrapper-side pass
    # over the inputs (no jnp.pad, no bf16 copy); callers that can hand over
    # feature-major data skip it entirely.
    obs_T = obs2.astype(jnp.float32).T          # [obs_dim, B]
    act_T = act2.astype(jnp.float32).T          # [act_dim, B]

    # Tiny weights: transpose to [out, in] and pre-cast to the MXU operand
    # dtype.  Split fc1 so the obs/action concat never materialises in HBM.
    wd = mxu_dtype
    w1_obs_T = params["w1"][:obs_dim].T.astype(wd)    # [H, obs_dim]
    w1_act_T = params["w1"][obs_dim:].T.astype(wd)    # [H, act_dim]
    b1_col = params["b1"].reshape(H, 1).astype(jnp.float32)
    hidden_T = [(wh.T.astype(wd), bh.reshape(H, 1).astype(jnp.float32))
                for (wh, bh) in params["hidden"]]
    wo_row = params["wo"].reshape(1, H).astype(wd)
    bo_scalar = params["bo"].reshape(1, 1).astype(jnp.float32)

    # Batch tile: multiple of 128 (lane width), as large as tile_b but capped so
    # the grid keeps >= min_grid_steps steps (v7x megacore needs >= 2 parallel
    # steps).  No batch padding: grid = cdiv(B, tile); the clamped tail reads
    # leave garbage only in batch columns >= B, which never mix with valid
    # columns and are sliced off below.
    want = _round_up(pl.cdiv(max(B, 1), max(1, int(min_grid_steps))), 128)
    tile = max(128, min(_round_up(int(tile_b), 128), want))
    grid = pl.cdiv(B, tile)
    out_cols = grid * tile   # pad only the write-only output row (a few KiB)

    args = [obs_T, act_T, w1_obs_T, w1_act_T, b1_col]
    for (wh_T, bh_col) in hidden_T:
        args += [wh_T, bh_col]
    args += [wo_row, bo_scalar]

    # Weights/biases are grid-resident (block index never changes).  At H=32
    # they total <100 KiB even double-buffered, so single-buffering them
    # (pl.Buffered(1)) buys nothing here; revisit for large hidden_dim on v7x.
    resident = lambda shape: pl.BlockSpec(shape, lambda i: (0, 0))

    in_specs = [
        pl.BlockSpec((obs_dim, tile), lambda i: (0, i)),
        pl.BlockSpec((act_dim, tile), lambda i: (0, i)),
        resident((H, obs_dim)),
        resident((H, act_dim)),
        resident((H, 1)),
    ]
    for _ in range(n_hidden_layers):
        in_specs += [resident((H, H)), resident((H, 1))]
    in_specs += [
        resident((1, H)),                                     # wo_row
        pl.BlockSpec(memory_space=pltpu.MemorySpace.SMEM),    # bo scalar
    ]

    out_spec = pl.BlockSpec((1, tile), lambda i: (0, i))

    vmem_limit = int(min(
        64 << 20,
        max(16 << 20,
            2 * _vmem_bytes_estimate(tile, obs_dim, act_dim, H, n_hidden_layers)),
    ))

    kernel = functools.partial(_critic_kernel, n_hidden_layers, mxu_dtype)

    q_row = pl.pallas_call(
        kernel,
        out_shape=jax.ShapeDtypeStruct((1, out_cols), jnp.float32),
        grid_spec=pltpu.PrefetchScalarGridSpec(
            num_scalar_prefetch=0,
            grid=(grid,),
            in_specs=in_specs,
            out_specs=out_spec,
        ),
        compiler_params=pltpu.CompilerParams(
            dimension_semantics=("parallel",),
            vmem_limit_bytes=vmem_limit,
        ),
    )(*args)

    # Layout plumbing only: lane-dense [1, out_cols] row -> [B, 1] column.
    return q_row[:, :B].reshape(B, 1)


def init_params(key, obs_dim, dim_actions, hidden_dim, n_hidden_layers):
    """Deterministic PyTorch-style init: U(-1/sqrt(fan_in), 1/sqrt(fan_in))."""
    input_shape = obs_dim + dim_actions

    def linear(key, fan_in, fan_out):
        kw, kb = jax.random.split(key)
        bound = 1.0 / jnp.sqrt(fan_in)
        w = jax.random.uniform(kw, (fan_in, fan_out), jnp.float32, -bound, bound)
        b = jax.random.uniform(kb, (1, fan_out), jnp.float32, -bound, bound)
        return w, b

    keys = jax.random.split(key, 2 + n_hidden_layers)
    w1, b1 = linear(keys[0], input_shape, hidden_dim)
    hidden = []
    for li in range(n_hidden_layers):
        hidden.append(linear(keys[1 + li], hidden_dim, hidden_dim))
    wo, bo = linear(keys[-1], hidden_dim, 1)
    return {"w1": w1, "b1": b1, "hidden": hidden, "wo": wo, "bo": bo}


def reference_forward(obs, actions, params):
    x = jnp.concatenate(
        [obs.reshape(-1, obs.shape[-1]), actions.reshape(-1, actions.shape[-1])],
        axis=-1,
    ).astype(jnp.float32)
    h = jax.nn.relu(x @ params["w1"] + params["b1"])
    for (wh, bh) in params["hidden"]:
        h = jax.nn.relu(h @ wh + bh)
    return h @ params["wo"] + params["bo"]


if __name__ == "__main__":
    # Small, deterministic configuration consistent with the module:
    #   scheme['obs']['vshape'] = 24, dim_actions = 8  -> input_shape = 32
    #   rnn_hidden_dim = 32, n_hidden_layers_critic = 1, pruning_rate = 0
    obs_dim = 24
    dim_actions = 8
    hidden_dim = 32
    n_hidden_layers = 1
    batch = 16  # e.g. (batch_size=8) x (n_homes=2) flattened rows

    key = jax.random.PRNGKey(0)
    k_obs, k_act, k_param, k_obs2, k_act2 = jax.random.split(key, 5)

    params = init_params(k_param, obs_dim, dim_actions, hidden_dim, n_hidden_layers)

    obs = jax.random.normal(k_obs, (batch, obs_dim), jnp.float32)
    actions = jax.random.normal(k_act, (batch, dim_actions), jnp.float32)
    q_ref = reference_forward(obs, actions, params)

    # f32 MXU path (exactness check vs. the pure-JAX reference).
    q = facmac_critic_forward(obs, actions, params, mxu_dtype=jnp.float32)
    q = jax.block_until_ready(q)
    assert q.shape == (batch, 1)
    assert jnp.allclose(q, q_ref, atol=1e-4, rtol=1e-4), "f32 mismatch vs reference"

    # bf16 MXU-operand path (weights pre-cast, activations cast in-kernel).
    q_bf16 = facmac_critic_forward(obs, actions, params, mxu_dtype=jnp.bfloat16)
    q_bf16 = jax.block_until_ready(q_bf16)
    assert q_bf16.shape == (batch, 1)
    assert float(jnp.max(jnp.abs(q_bf16 - q_ref))) < 0.1, "bf16 path deviates too much"

    # Larger, non-tile-aligned batch: exercises the multi-step grid (>= 2 steps
    # for v7x megacore) and the clamped partial tail block (no jnp.pad).
    batch2 = 300
    obs_big = jax.random.normal(k_obs2, (batch2, obs_dim), jnp.float32)
    act_big = jax.random.normal(k_act2, (batch2, dim_actions), jnp.float32)
    q2_ref = reference_forward(obs_big, act_big, params)
    q2 = facmac_critic_forward(obs_big, act_big, params, mxu_dtype=jnp.float32)
    q2 = jax.block_until_ready(q2)
    assert q2.shape == (batch2, 1)
    assert jnp.allclose(q2, q2_ref, atol=1e-4, rtol=1e-4), "tail/multi-step mismatch"

    print("KERNEL_OK")
</pallas_src>

<mosaic_0001>
module attributes {stable_mosaic.version = 11 : i64} {
  func.func @_critic_kernel(%arg0: i32, %arg1: memref<24x128xf32, #tpu.memory_space<vmem>>, %arg2: memref<8x128xf32, #tpu.memory_space<vmem>>, %arg3: memref<32x24xf32, #tpu.memory_space<vmem>>, %arg4: memref<32x8xf32, #tpu.memory_space<vmem>>, %arg5: memref<32x1xf32, #tpu.memory_space<vmem>>, %arg6: memref<32x32xf32, #tpu.memory_space<vmem>>, %arg7: memref<32x1xf32, #tpu.memory_space<vmem>>, %arg8: memref<1x32xf32, #tpu.memory_space<vmem>>, %arg9: memref<1x1xf32, #tpu.memory_space<smem>>, %arg10: memref<1x128xf32, #tpu.memory_space<vmem>>) attributes {dimension_semantics = [#tpu.dimension_semantics<parallel>], iteration_bounds = array<i64: 1>, scalar_prefetch = 0 : i64, scratch_operands = 0 : i64, tpu.core_type = #tpu.core_type<tc>, window_params = [{transform_indices = @transform_0, window_bounds = array<i64: 24, 128>}, {transform_indices = @transform_1, window_bounds = array<i64: 8, 128>}, {pipeline_mode = #tpu.pipeline_mode<synchronous>, transform_indices = @transform_2, window_bounds = array<i64: 32, 24>}, {pipeline_mode = #tpu.pipeline_mode<synchronous>, transform_indices = @transform_3, window_bounds = array<i64: 32, 8>}, {pipeline_mode = #tpu.pipeline_mode<synchronous>, transform_indices = @transform_4, window_bounds = array<i64: 32, 1>}, {pipeline_mode = #tpu.pipeline_mode<synchronous>, transform_indices = @transform_5, window_bounds = array<i64: 32, 32>}, {pipeline_mode = #tpu.pipeline_mode<synchronous>, transform_indices = @transform_6, window_bounds = array<i64: 32, 1>}, {pipeline_mode = #tpu.pipeline_mode<synchronous>, transform_indices = @transform_7, window_bounds = array<i64: 1, 32>}, {transform_indices = @transform_8, window_bounds = array<i64: 1, 1>}, {transform_indices = @transform_9, window_bounds = array<i64: 1, 128>}]} {
    %c0 = arith.constant 0 : index
    %c0_0 = arith.constant 0 : index
    %0 = vector.load %arg1[%c0, %c0_0] : memref<24x128xf32, #tpu.memory_space<vmem>>, vector<24x128xf32>
    %c0_1 = arith.constant 0 : index
    %c0_2 = arith.constant 0 : index
    %1 = vector.load %arg2[%c0_1, %c0_2] : memref<8x128xf32, #tpu.memory_space<vmem>>, vector<8x128xf32>
    %c0_3 = arith.constant 0 : index
    %c0_4 = arith.constant 0 : index
    %2 = vector.load %arg3[%c0_3, %c0_4] : memref<32x24xf32, #tpu.memory_space<vmem>>, vector<32x24xf32>
    %cst = arith.constant dense<0.000000e+00> : vector<32x128xf32>
    %3 = tpu.matmul %2, %0, %cst {dimension_numbers = #tpu.dot_dimension_numbers<[1], [0], [0], [1], [0, 0, 1, 1], [], []>} : vector<32x24xf32>, vector<24x128xf32>, vector<32x128xf32> -> vector<32x128xf32>
    %c0_5 = arith.constant 0 : index
    %c0_6 = arith.constant 0 : index
    %4 = vector.load %arg4[%c0_5, %c0_6] : memref<32x8xf32, #tpu.memory_space<vmem>>, vector<32x8xf32>
    %cst_7 = arith.constant dense<0.000000e+00> : vector<32x128xf32>
    %5 = tpu.matmul %4, %1, %cst_7 {dimension_numbers = #tpu.dot_dimension_numbers<[1], [0], [0], [1], [0, 0, 1, 1], [], []>} : vector<32x8xf32>, vector<8x128xf32>, vector<32x128xf32> -> vector<32x128xf32>
    %6 = arith.addf %3, %5 : vector<32x128xf32>
    %c0_8 = arith.constant 0 : index
    %c0_9 = arith.constant 0 : index
    %7 = vector.load %arg5[%c0_8, %c0_9] : memref<32x1xf32, #tpu.memory_space<vmem>>, vector<32x1xf32>
    %8 = vector.broadcast %7 : vector<32x1xf32> to vector<32x128xf32>
    %9 = arith.addf %6, %8 : vector<32x128xf32>
    %cst_10 = arith.constant 0.000000e+00 : f32
    %10 = vector.broadcast %cst_10 : f32 to vector<32x128xf32>
    %11 = arith.maximumf %9, %10 : vector<32x128xf32>
    %c0_11 = arith.constant 0 : index
    %c0_12 = arith.constant 0 : index
    %12 = vector.load %arg6[%c0_11, %c0_12] : memref<32x32xf32, #tpu.memory_space<vmem>>, vector<32x32xf32>
    %c0_13 = arith.constant 0 : index
    %c0_14 = arith.constant 0 : index
    %13 = vector.load %arg7[%c0_13, %c0_14] : memref<32x1xf32, #tpu.memory_space<vmem>>, vector<32x1xf32>
    %cst_15 = arith.constant dense<0.000000e+00> : vector<32x128xf32>
    %14 = tpu.matmul %12, %11, %cst_15 {dimension_numbers = #tpu.dot_dimension_numbers<[1], [0], [0], [1], [0, 0, 1, 1], [], []>} : vector<32x32xf32>, vector<32x128xf32>, vector<32x128xf32> -> vector<32x128xf32>
    %15 = vector.broadcast %13 : vector<32x1xf32> to vector<32x128xf32>
    %16 = arith.addf %14, %15 : vector<32x128xf32>
    %cst_16 = arith.constant 0.000000e+00 : f32
    %17 = vector.broadcast %cst_16 : f32 to vector<32x128xf32>
    %18 = arith.maximumf %16, %17 : vector<32x128xf32>
    %c0_17 = arith.constant 0 : index
    %c0_18 = arith.constant 0 : index
    %19 = vector.load %arg8[%c0_17, %c0_18] : memref<1x32xf32, #tpu.memory_space<vmem>>, vector<1x32xf32>
    %cst_19 = arith.constant dense<0.000000e+00> : vector<1x128xf32>
    %20 = tpu.matmul %19, %18, %cst_19 {dimension_numbers = #tpu.dot_dimension_numbers<[1], [0], [0], [1], [0, 0, 1, 1], [], []>} : vector<1x32xf32>, vector<32x128xf32>, vector<1x128xf32> -> vector<1x128xf32>
    %c0_20 = arith.constant 0 : index
    %c0_21 = arith.constant 0 : index
    %21 = memref.load %arg9[%c0_20, %c0_21] : memref<1x1xf32, #tpu.memory_space<smem>>
    %22 = vector.broadcast %21 : f32 to vector<1x128xf32>
    %23 = arith.addf %20, %22 : vector<1x128xf32>
    %c0_22 = arith.constant 0 : index
    %c0_23 = arith.constant 0 : index
    %24 = vector.load %arg10[%c0_22, %c0_23] : memref<1x128xf32, #tpu.memory_space<vmem>>, vector<1x128xf32>
    tpu.vector_store %arg10[%c0_22, %c0_23], %23 {strides = array<i32>} : memref<1x128xf32, #tpu.memory_space<vmem>>, vector<1x128xf32>,
    return
  }
  func.func @transform_0(%arg0: i32) -> (i32, i32) {
    %c0_i32 = arith.constant 0 : i32
    %c0_i32_0 = arith.constant 0 : i32
    return %c0_i32, %arg0 : i32, i32
  }
  func.func @transform_1(%arg0: i32) -> (i32, i32) {
    %c0_i32 = arith.constant 0 : i32
    %c0_i32_0 = arith.constant 0 : i32
    return %c0_i32, %arg0 : i32, i32
  }
  func.func @transform_2(%arg0: i32) -> (i32, i32) {
    %c0_i32 = arith.constant 0 : i32
    %c0_i32_0 = arith.constant 0 : i32
    %c0_i32_1 = arith.constant 0 : i32
    return %c0_i32, %c0_i32_0 : i32, i32
  }
  func.func @transform_3(%arg0: i32) -> (i32, i32) {
    %c0_i32 = arith.constant 0 : i32
    %c0_i32_0 = arith.constant 0 : i32
    %c0_i32_1 = arith.constant 0 : i32
    return %c0_i32, %c0_i32_0 : i32, i32
  }
  func.func @transform_4(%arg0: i32) -> (i32, i32) {
    %c0_i32 = arith.constant 0 : i32
    %c0_i32_0 = arith.constant 0 : i32
    %c0_i32_1 = arith.constant 0 : i32
    return %c0_i32, %c0_i32_0 : i32, i32
  }
  func.func @transform_5(%arg0: i32) -> (i32, i32) {
    %c0_i32 = arith.constant 0 : i32
    %c0_i32_0 = arith.constant 0 : i32
    %c0_i32_1 = arith.constant 0 : i32
    return %c0_i32, %c0_i32_0 : i32, i32
  }
  func.func @transform_6(%arg0: i32) -> (i32, i32) {
    %c0_i32 = arith.constant 0 : i32
    %c0_i32_0 = arith.constant 0 : i32
    %c0_i32_1 = arith.constant 0 : i32
    return %c0_i32, %c0_i32_0 : i32, i32
  }
  func.func @transform_7(%arg0: i32) -> (i32, i32) {
    %c0_i32 = arith.constant 0 : i32
    %c0_i32_0 = arith.constant 0 : i32
    %c0_i32_1 = arith.constant 0 : i32
    return %c0_i32, %c0_i32_0 : i32, i32
  }
  func.func @transform_8(%arg0: i32) -> (i32, i32) {
    %c0_i32 = arith.constant 0 : i32
    %c0_i32_0 = arith.constant 0 : i32
    %c0_i32_1 = arith.constant 0 : i32
    return %c0_i32, %c0_i32_0 : i32, i32
  }
  func.func @transform_9(%arg0: i32) -> (i32, i32) {
    %c0_i32 = arith.constant 0 : i32
    %c0_i32_0 = arith.constant 0 : i32
    return %c0_i32, %arg0 : i32, i32
  }
}

</mosaic_0001>

<llo_original>
// kernel: tpu_custom_call.1
$region0: #{tpu_custom_call.1}
  #allocation0 [shape = 'u32[]', space=smem, size = 0x4, offset = 0x4, fixed_abs, tag = 'smem constant byte address 0x4 - core index']
  #allocation1 [shape = 'u32[72,128]{1,0:T(1,128)}', space=vmem, size = 0x9000, scoped, tag = 'internal scratch']
  #allocation2 [shape = 'f32[1,1]{1,0:T(1,128)S(6)}', space=smem, size = 0x200, scoped, tag = 'scoped memory for tpu_custom_call.1']
  %s0 = inlined_call_operand.vmem [shape: f32[24,16], index: 0, kind: input, shape index: {}]
  %s1 = inlined_call_operand.vmem [shape: f32[8,16], index: 1, kind: input, shape index: {}]
  %s2 = inlined_call_operand.vmem [shape: f32[32,24], index: 2, kind: input, shape index: {}]
  %s3 = inlined_call_operand.vmem [shape: f32[32,8], index: 3, kind: input, shape index: {}]
  %s4 = inlined_call_operand.vmem [shape: f32[32,1], index: 4, kind: input, shape index: {}]
  %s5 = inlined_call_operand.vmem [shape: f32[32,32], index: 5, kind: input, shape index: {}]
  %s6 = inlined_call_operand.vmem [shape: f32[32,1], index: 6, kind: input, shape index: {}]
  %s7 = inlined_call_operand.vmem [shape: f32[1,32], index: 7, kind: input, shape index: {}]
  %s8 = inlined_call_operand.<no memory space> [shape: f32[1,1], index: 8, kind: input, shape index: {}]
  %s9 = inlined_call_operand.hbm [shape: f32[1,128], index: 9, kind: output, shape index: {}]
  %s10 = sld [smem:[#allocation0]]
  $region46: #{tpu_custom_call.1} parent=0
    _
  %s12 = ssub.s32 1, %s10
  %s13 = scalar_select 0, %s12, %s10
  %14 = sst [smem:[#allocation2]] %s8
  $region1: #{tpu_custom_call.1} parent=0
    #allocation3 [shape = 'u8[512]{0}', space=vmem, size = 0x400, scoped, tag = 'output window, operand 0, single buffered']
    #allocation4 [shape = 's32[1]{0}', space=sflag, size = 0x4, scoped, tag = 'scoped memory for tpu_custom_call.1']
    %15 = vsyncpa [#allocation4], 0
    // Predicated region
    $region2: #{tpu_custom_call.1} parent=1 // pred_check
      _
    $region3: #{tpu_custom_call.1} parent=1 // pred_check_branch
      %17 = sbr.rel (0) target = $region5
    $region4: #{tpu_custom_call.1} parent=1 // pred_region
      _
    $region5: #{tpu_custom_call.1} parent=1 // pred_fallthru
      _
    // Predicated region
    $region6: #{tpu_custom_call.1} parent=1 // pred_check
      _
    $region7: #{tpu_custom_call.1} parent=1 // pred_check_branch
      %19 = sbr.rel (0) target = $region9
    $region8: #{tpu_custom_call.1} parent=1 // pred_region
      _
    $region9: #{tpu_custom_call.1} parent=1 // pred_fallthru
      _
    // Predicated region
    $region10: #{tpu_custom_call.1} parent=1 // pred_check
      _
    $region11: #{tpu_custom_call.1} parent=1 // pred_check_branch
      %21 = sbr.rel (0) target = $region13
    $region12: #{tpu_custom_call.1} parent=1 // pred_region
      _
    $region13: #{tpu_custom_call.1} parent=1 // pred_fallthru
      _
    // Predicated region
    $region14: #{tpu_custom_call.1} parent=1 // pred_check
      _
    $region15: #{tpu_custom_call.1} parent=1 // pred_check_branch
      %23 = sbr.rel (0) target = $region17
    $region16: #{tpu_custom_call.1} parent=1 // pred_region
      _
    $region17: #{tpu_custom_call.1} parent=1 // pred_fallthru
      _
    // Predicated region
    $region18: #{tpu_custom_call.1} parent=1 // pred_check
      _
    $region19: #{tpu_custom_call.1} parent=1 // pred_check_branch
      %25 = sbr.rel (0) target = $region21
    $region20: #{tpu_custom_call.1} parent=1 // pred_region
      _
    $region21: #{tpu_custom_call.1} parent=1 // pred_fallthru
      _
    // Predicated region
    $region22: #{tpu_custom_call.1} parent=1 // pred_check
      _
    $region23: #{tpu_custom_call.1} parent=1 // pred_check_branch
      %27 = sbr.rel (0) target = $region25
    $region24: #{tpu_custom_call.1} parent=1 // pred_region
      _
    $region25: #{tpu_custom_call.1} parent=1 // pred_fallthru
      _
    // Predicated region
    $region26: #{tpu_custom_call.1} parent=1 // pred_check
      _
    $region27: #{tpu_custom_call.1} parent=1 // pred_check_branch
      %29 = sbr.rel (0) target = $region29
    $region28: #{tpu_custom_call.1} parent=1 // pred_region
      _
    $region29: #{tpu_custom_call.1} parent=1 // pred_fallthru
      _
    // Predicated region
    $region30: #{tpu_custom_call.1} parent=1 // pred_check
      _
    $region31: #{tpu_custom_call.1} parent=1 // pred_check_branch
      %31 = sbr.rel (0) target = $region33
    $region32: #{tpu_custom_call.1} parent=1 // pred_region
      _
    $region33: #{tpu_custom_call.1} parent=1 // pred_fallthru
      _
    // Predicated region
    $region34: #{tpu_custom_call.1} parent=1 // pred_check
      _
    $region35: #{tpu_custom_call.1} parent=1 // pred_check_branch
      %33 = sbr.rel (0) target = $region37
    $region36: #{tpu_custom_call.1} parent=1 // pred_region
      _
    $region37: #{tpu_custom_call.1} parent=1 // pred_fallthru
      _
    %v34 = vld [vmem:[%s0] sm:$0xff]
    %v35 = vld [vmem:[%s0 + $0x8] sm:$0xff]
    %v36 = vld [vmem:[%s0 + $0x10] sm:$0xff]
    %v37 = vld [vmem:[%s1] sm:$0xff]
    %v38 = vld [vmem:[%s2] sm:$0xff]
    %v39 = vld [vmem:[%s2 + $0x8] sm:$0xff]
    %v40 = vld [vmem:[%s2 + $0x10] sm:$0xff]
    %v41 = vld [vmem:[%s2 + $0x18] sm:$0xff]
    %v42 = vld [vmem:[%s3] sm:$0xff]
    %v43 = vld [vmem:[%s3 + $0x8] sm:$0xff]
    %v44 = vld [vmem:[%s3 + $0x10] sm:$0xff]
    %v45 = vld [vmem:[%s3 + $0x18] sm:$0xff]
    %vm46 = vcmask 64512
    %v48 = vsel %vm46, %v42, 0
    %v51 = vsel %vm46, %v43, 0
    %v54 = vsel %vm46, %v44, 0
    %v57 = vsel %vm46, %v45, 0
    %59 = vmatpush.msra.mxu0 0.0
    %60 = vmatpush.msra.mxu0 0.0
    %61 = vmatpush.msra.mxu0 0.0
    %62 = vmatpush.msra.mxu0 0.0
    %63 = vmatpush.msra.mxu0 0.0
    %64 = vmatpush.msra.mxu0 0.0
    %65 = vmatpush.msra.mxu0 0.0
    %66 = vmatpush.msra.mxu0 0.0
    %67 = vmatpush.msra.mxu0 0.0
    %68 = vmatpush.msra.mxu0 0.0
    %69 = vmatpush.msra.mxu0 0.0
    %70 = vmatpush.msra.mxu0 0.0
    %71 = vmatpush.msra.mxu0 0.0
    %72 = vmatpush.msra.mxu0 0.0
    %73 = vmatpush.msra.mxu0 0.0
    %74 = vmatpush.msra.mxu0 %v37
    %75 = vmatmul.f32.gmra.mxu0 %v48
    %v76 = vpop.f32.mrf.mxu0
    %v77 = vadd.f32 0.0, %v76
    %78 = vmatmul.f32.gmra.mxu0 %v51
    %v79 = vpop.f32.mrf.mxu0
    %v80 = vadd.f32 0.0, %v79
    %81 = vmatmul.f32.gmra.mxu0 %v54
    %v82 = vpop.f32.mrf.mxu0
    %v83 = vadd.f32 0.0, %v82
    %84 = vmatmul.f32.gmra.mxu0 %v57
    %v85 = vpop.f32.mrf.mxu0
    %v86 = vadd.f32 0.0, %v85
    %87 = vdwg.mxu0
    %vm88 = vcmask 195584
    %v90 = vsel %vm88, %v38, 0
    %v93 = vsel %vm88, %v39, 0
    %v96 = vsel %vm88, %v40, 0
    %v99 = vsel %vm88, %v41, 0
    %101 = vmatpush.msra.mxu0 0.0
    %102 = vmatpush.msra.mxu0 0.0
    %103 = vmatpush.msra.mxu0 0.0
    %104 = vmatpush.msra.mxu0 0.0
    %105 = vmatpush.msra.mxu0 0.0
    %106 = vmatpush.msra.mxu0 0.0
    %107 = vmatpush.msra.mxu0 0.0
    %108 = vmatpush.msra.mxu0 0.0
    %109 = vmatpush.msra.mxu0 0.0
    %110 = vmatpush.msra.mxu0 0.0
    %111 = vmatpush.msra.mxu0 0.0
    %112 = vmatpush.msra.mxu0 0.0
    %113 = vmatpush.msra.mxu0 0.0
    %114 = vmatpush.msra.mxu0 %v36
    %115 = vmatpush.msra.mxu0 %v35
    %116 = vmatpush.msra.mxu0 %v34
    %117 = vmatmul.f32.gmra.mxu0 %v90
    %v118 = vpop.f32.mrf.mxu0
    %v119 = vadd.f32 %v77, %v118
    %120 = vmatmul.f32.gmra.mxu0 %v93
    %v121 = vpop.f32.mrf.mxu0
    %v122 = vadd.f32 %v80, %v121
    %123 = vmatmul.f32.gmra.mxu0 %v96
    %v124 = vpop.f32.mrf.mxu0
    %v125 = vadd.f32 %v83, %v124
    %126 = vmatmul.f32.gmra.mxu0 %v99
    %v127 = vpop.f32.mrf.mxu0
    %v128 = vadd.f32 %v86, %v127
    %129 = vdwg.mxu0
    %v130 = vld [vmem:[%s4] sm:$0xff]
    %v131 = vld [vmem:[%s4 + $0x8] sm:$0xff]
    %v132 = vld [vmem:[%s4 + $0x10] sm:$0xff]
    %v133 = vld [vmem:[%s4 + $0x18] sm:$0xff]
    %135 = vset.pattern.permute.xlu0 0
    %136 = vperm.xlu0 %135, %v130
    %v137 = vpop.permute.xlu0 %136
    %140 = vset.pattern.permute.xlu0 0
    %141 = vperm.xlu0 %140, %v131
    %v142 = vpop.permute.xlu0 %141
    %145 = vset.pattern.permute.xlu0 0
    %146 = vperm.xlu0 %145, %v132
    %v147 = vpop.permute.xlu0 %146
    %150 = vset.pattern.permute.xlu0 0
    %151 = vperm.xlu0 %150, %v133
    %v152 = vpop.permute.xlu0 %151
    %v154 = vadd.f32 %v119, %v137
    %v155 = vadd.f32 %v122, %v142
    %v156 = vadd.f32 %v125, %v147
    %v157 = vadd.f32 %v128, %v152
    %v158 = vmax.f32 %v154, 0.0
    %v159 = vmax.f32 %v155, 0.0
    %v160 = vmax.f32 %v156, 0.0
    %v161 = vmax.f32 %v157, 0.0
    %v162 = vld [vmem:[%s5] sm:$0xff]
    %v163 = vld [vmem:[%s5 + $0x8] sm:$0xff]
    %v164 = vld [vmem:[%s5 + $0x10] sm:$0xff]
    %v165 = vld [vmem:[%s5 + $0x18] sm:$0xff]
    %v166 = vld [vmem:[%s6] sm:$0xff]
    %v167 = vld [vmem:[%s6 + $0x8] sm:$0xff]
    %v168 = vld [vmem:[%s6 + $0x10] sm:$0xff]
    %v169 = vld [vmem:[%s6 + $0x18] sm:$0xff]
    %171 = vset.pattern.permute.xlu0 0
    %172 = vperm.xlu0 %171, %v166
    %v173 = vpop.permute.xlu0 %172
    %176 = vset.pattern.permute.xlu0 0
    %177 = vperm.xlu0 %176, %v167
    %v178 = vpop.permute.xlu0 %177
    %181 = vset.pattern.permute.xlu0 0
    %182 = vperm.xlu0 %181, %v168
    %v183 = vpop.permute.xlu0 %182
    %186 = vset.pattern.permute.xlu0 0
    %187 = vperm.xlu0 %186, %v169
    %v188 = vpop.permute.xlu0 %187
    %vm190 = vcmask 261120
    %v192 = vsel %vm190, %v162, 0
    %v195 = vsel %vm190, %v163, 0
    %v198 = vsel %vm190, %v164, 0
    %v201 = vsel %vm190, %v165, 0
    %203 = vmatpush.msra.mxu0 0.0
    %204 = vmatpush.msra.mxu0 0.0
    %205 = vmatpush.msra.mxu0 0.0
    %206 = vmatpush.msra.mxu0 0.0
    %207 = vmatpush.msra.mxu0 0.0
    %208 = vmatpush.msra.mxu0 0.0
    %209 = vmatpush.msra.mxu0 0.0
    %210 = vmatpush.msra.mxu0 0.0
    %211 = vmatpush.msra.mxu0 0.0
    %212 = vmatpush.msra.mxu0 0.0
    %213 = vmatpush.msra.mxu0 0.0
    %214 = vmatpush.msra.mxu0 0.0
    %215 = vmatpush.msra.mxu0 %v161
    %216 = vmatpush.msra.mxu0 %v160
    %217 = vmatpush.msra.mxu0 %v159
    %218 = vmatpush.msra.mxu0 %v158
    %219 = vmatmul.f32.gmra.mxu0 %v192
    %v220 = vpop.f32.mrf.mxu0
    %v221 = vadd.f32 %v173, %v220
    %222 = vmatmul.f32.gmra.mxu0 %v195
    %v223 = vpop.f32.mrf.mxu0
    %v224 = vadd.f32 %v178, %v223
    %225 = vmatmul.f32.gmra.mxu0 %v198
    %v226 = vpop.f32.mrf.mxu0
    %v227 = vadd.f32 %v183, %v226
    %228 = vmatmul.f32.gmra.mxu0 %v201
    %v229 = vpop.f32.mrf.mxu0
    %v230 = vadd.f32 %v188, %v229
    %231 = vdwg.mxu0
    %v232 = vmax.f32 %v221, 0.0
    %v233 = vmax.f32 %v224, 0.0
    %v234 = vmax.f32 %v227, 0.0
    %v235 = vmax.f32 %v230, 0.0
    %v236 = vld [vmem:[%s7] sm:$0x1]
    %s237 = sld [smem:[#allocation2]]
    %v238 = vstv %s237
    %v240 = vsel %vm190, %v236, 0
    %242 = vmatpush.msra.mxu0 0.0
    %243 = vmatpush.msra.mxu0 0.0
    %244 = vmatpush.msra.mxu0 0.0
    %245 = vmatpush.msra.mxu0 0.0
    %246 = vmatpush.msra.mxu0 0.0
    %247 = vmatpush.msra.mxu0 0.0
    %248 = vmatpush.msra.mxu0 0.0
    %249 = vmatpush.msra.mxu0 0.0
    %250 = vmatpush.msra.mxu0 0.0
    %251 = vmatpush.msra.mxu0 0.0
    %252 = vmatpush.msra.mxu0 0.0
    %253 = vmatpush.msra.mxu0 0.0
    %254 = vmatpush.msra.mxu0 %v235
    %255 = vmatpush.msra.mxu0 %v234
    %256 = vmatpush.msra.mxu0 %v233
    %257 = vmatpush.msra.mxu0 %v232
    %258 = vmatmul.f32.gmra.mxu0 %v240
    %v259 = vpop.f32.mrf.mxu0
    %v260 = vadd.f32 %v238, %v259
    %261 = vdwg.mxu0
    %262 = vst [vmem:[#allocation3] sm:$0x1] %v260
    // Predicated region
    $region38: #{tpu_custom_call.1} parent=1 // pred_check
      _
    $region39: #{tpu_custom_call.1} parent=1 // pred_check_branch
      %264 = sbr.rel (0) target = $region41
    $region40: #{tpu_custom_call.1} parent=1 // pred_region
      %266 = vsyncadd [#allocation4], 0
      %s268 = sshll.u32 [#allocation3], 4
      %s269 = int_to_ptr.vmem [resolvable:$true] %s268
      %s270 = sshll.u32 %s9, 4
      %s271 = int_to_ptr.hbm [resolvable:$true] %s270
      %273 = dma.vmem_to_hbm [thread:$0]  %s269, 16, %s271, [#allocation4]
    $region41: #{tpu_custom_call.1} parent=1 // pred_fallthru
      _
    // Predicated region
    $region42: #{tpu_custom_call.1} parent=1 // pred_check
      _
    $region43: #{tpu_custom_call.1} parent=1 // pred_check_branch
      %275 = sbr.rel (0) target = $region45
    $region44: #{tpu_custom_call.1} parent=1 // pred_region
      %277 = dma.done [#allocation4], 16
    $region45: #{tpu_custom_call.1} parent=1 // pred_fallthru
      _
    %278 = vsyncpa [#allocation4], 1

</llo_original>
